<compile_context>
chip_gen: v7x
topology: tpu7x:2x2x1
jax: 0.10.0
libtpu: 0.0.40
codegen_flags: <defaults>
</compile_context>

<pallas_src>
import functools

import jax
import jax.numpy as jnp
from jax.experimental import pallas as pl
from jax.experimental.pallas import tpu as pltpu


# ----------------------------- Pallas kernel --------------------------------


def _bilstm_fused_kernel(latch_ref, gx_ref, whh_ref, out_ref, *, T, B, H):
    """Both LSTM directions advanced together in one serial recurrence.

    latch_ref : SMEM (B,) int32   per-row timestep whose FORWARD hidden to emit
    gx_ref    : VMEM (T, B, 8H)   x @ W_ih + b for both directions, columns
                                  gate-major/dir-minor [i_f,i_b,f_f,f_b,g_f,
                                  g_b,o_f,o_b]; bwd half already time-reversed
    whh_ref   : VMEM (2H, 8H)     block-diagonal recurrent weights, rows
                                  [h_fwd | h_bwd], same column layout as gx
    out_ref   : VMEM (B, 2H)      [fwd hidden @ len-1 | bwd hidden @ t=0]
    """
    H2, H8 = 2 * H, 8 * H
    w_hh = whh_ref[...]                                            # (2H, 8H)

    # Per-row forward latch target broadcast to the (B, 2H) state tile.
    # Built once before the loop from B SMEM scalar reads (B is small, static).
    row = jax.lax.broadcasted_iota(jnp.int32, (B, H2), 0)
    target = jnp.full((B, H2), -1, jnp.int32)
    for b in range(B):
        target = jnp.where(row == b, latch_ref[b], target)

    # Lane mask for the g (cell-candidate) gate columns [4H, 6H).
    lane = jax.lax.broadcasted_iota(jnp.int32, (B, H8), 1)
    g_cols = (lane >= 4 * H) & (lane < 6 * H)

    def step(s, carry):
        h, c, latched = carry                                      # (B, 2H) each
        # Only recurrent matmul is on the critical path: (B,2H)@(2H,8H).
        gates = gx_ref[s] + jnp.dot(h, w_hh,
                                    preferred_element_type=jnp.float32)
        # Single tanh pass: sigmoid(x) = 0.5*tanh(x/2) + 0.5  -> 1 EUP push.
        t = jnp.tanh(jnp.where(g_cols, gates, 0.5 * gates))
        act = jnp.where(g_cols, t, 0.5 * t + 0.5)
        i = act[:, 0 * H2:1 * H2]                                  # [i_f | i_b]
        f = act[:, 1 * H2:2 * H2]                                  # [f_f | f_b]
        g = act[:, 2 * H2:3 * H2]                                  # [g_f | g_b]
        o = act[:, 3 * H2:4 * H2]                                  # [o_f | o_b]
        c_new = f * c + i * g
        h_new = o * jnp.tanh(c_new)
        latched = jnp.where(s == target, h_new, latched)
        return h_new, c_new, latched

    zeros = jnp.zeros((B, H2), jnp.float32)
    # T=8 here: full unroll is fine.  For large T use partial unroll (4..8).
    h_fin, _, latched = jax.lax.fori_loop(0, T, step, (zeros, zeros, zeros),
                                          unroll=True)

    # Forward half from the latched state; backward half from the final state
    # (the backward direction reaches t=0 on the last loop iteration).
    lane2 = jax.lax.broadcasted_iota(jnp.int32, (B, H2), 1)
    out_ref[...] = jnp.where(lane2 < H, latched, h_fin)


# ------------------------------ JAX wrappers ---------------------------------


def bilstm_final_hiddens(latch, gx_fused, whh_bd, *, T, B, H):
    """latch: (B,) int32; gx_fused: (T, B, 8H) f32; whh_bd: (2H, 8H) f32.

    Returns (B, 2H) f32 = [forward hidden at len-1 | backward hidden at t=0].
    """
    H2, H8 = 2 * H, 8 * H
    kernel = functools.partial(_bilstm_fused_kernel, T=T, B=B, H=H)
    return pl.pallas_call(
        kernel,
        out_shape=jax.ShapeDtypeStruct((B, H2), jnp.float32),
        grid_spec=pltpu.PrefetchScalarGridSpec(
            num_scalar_prefetch=1,          # latch -> SMEM scalars
            grid=(1,),
            in_specs=[
                pl.BlockSpec((T, B, H8), lambda i, latch: (0, 0, 0)),
                pl.BlockSpec((H2, H8), lambda i, latch: (0, 0)),
            ],
            out_specs=pl.BlockSpec((B, H2), lambda i, latch: (0, 0)),
        ),
        compiler_params=pltpu.CompilerParams(
            dimension_semantics=("arbitrary",)),
    )(latch, gx_fused, whh_bd)


def blstm_forward(params, sen_batch, sen_lengths):
    """Reproduces BLSTM.forward.

    sen_batch: (B, max_len) int32 token ids; sen_lengths: (B,) int32.
    Returns (B, output_dim) float32.
    """
    B, T = sen_batch.shape
    H = params["whh_bd"].shape[0] // 2
    H4, H8 = 4 * H, 8 * H

    # ' Embedding Layer ' — gathered directly into time-major flattened layout.
    tokens_tb = jnp.transpose(sen_batch).reshape(-1)               # (T*B,)
    x_flat = params["emb"][tokens_tb]                              # (T*B, E)

    # Hoisted input projection for BOTH directions in one wide matmul
    # (N = 8H = 256 fills the v6e/v7x MXU), done in XLA outside the kernel.
    gx = x_flat @ params["w_ih_cat"] + params["b_cat"]             # (T*B, 8H)
    gx = gx.reshape(T, B, 2, 4, H)                                 # (t, b, dir, gate, H)
    # Interleave gate-major/dir-minor and time-flip the backward half so that
    # loop step s consumes fwd input at t=s and bwd input at t=T-1-s.
    gx_fused = jnp.stack([gx[:, :, 0], gx[::-1, :, 1]],
                         axis=3).reshape(T, B, H8)

    # Pad batch to a full 8-sublane tile (near-free throughput).
    Bp = max(8, -(-B // 8) * 8)
    if Bp != B:
        gx_fused = jnp.pad(gx_fused, ((0, 0), (0, Bp - B), (0, 0)))

    # Forward latch target = len-1, clamped to [0, T-1]; padded rows use T so
    # they never latch (their output rows are sliced off anyway).
    latch = jnp.clip(sen_lengths.astype(jnp.int32) - 1, 0, T - 1)
    latch = jnp.pad(latch, (0, Bp - B), constant_values=T)

    finals = bilstm_final_hiddens(latch, gx_fused, params["whh_bd"],
                                  T=T, B=Bp, H=H)                  # (Bp, 2H)
    sentence = finals[:B]                                          # (B, 2H)

    # ' output Linear ' — tiny (B, 2H) @ (2H, O); kept in plain XLA.
    return sentence @ params["w_out_t"] + params["b_out"]


# ------------------------------ pure-JAX reference ---------------------------


def _lstm_ref_dir(x_tbe, w_ih_t, w_hh_t, bias, H, reverse):
    T, B, _ = x_tbe.shape
    xs = x_tbe[::-1] if reverse else x_tbe

    def step(carry, xt):
        h, c = carry
        gates = xt @ w_ih_t + h @ w_hh_t + bias
        i = jax.nn.sigmoid(gates[:, 0 * H:1 * H])
        f = jax.nn.sigmoid(gates[:, 1 * H:2 * H])
        g = jnp.tanh(gates[:, 2 * H:3 * H])
        o = jax.nn.sigmoid(gates[:, 3 * H:4 * H])
        c = f * c + i * g
        h = o * jnp.tanh(c)
        return (h, c), h

    init = (jnp.zeros((B, H), jnp.float32), jnp.zeros((B, H), jnp.float32))
    _, hs = jax.lax.scan(step, init, xs)
    return hs[::-1] if reverse else hs                             # (T, B, H)


def blstm_forward_ref(params, sen_batch, sen_lengths):
    emb = params["emb"]
    x_bte = emb[sen_batch]
    B, T, E = x_bte.shape
    H = params["w_hh_t"].shape[1]
    x_tbe = jnp.transpose(x_bte, (1, 0, 2))
    fwd = _lstm_ref_dir(x_tbe, params["w_ih_t"][0], params["w_hh_t"][0],
                        params["lstm_bias"][0], H, reverse=False)
    bwd = _lstm_ref_dir(x_tbe, params["w_ih_t"][1], params["w_hh_t"][1],
                        params["lstm_bias"][1], H, reverse=True)
    batch_ar = jnp.arange(B)
    fw_out = fwd[sen_lengths - 1, batch_ar]
    bw_out = bwd[0, batch_ar]
    sentence = jnp.concatenate([fw_out, bw_out], axis=1)
    return sentence @ params["w_out_t"] + params["b_out"]


# ---------------------------------- params -----------------------------------


def make_params(key, vocab, input_dim, hidden_dim, output_dim):
    ks = jax.random.split(key, 8)
    H = hidden_dim
    scale = 1.0 / jnp.sqrt(hidden_dim)
    emb = jax.random.normal(ks[0], (vocab, input_dim), jnp.float32) * 0.1
    emb = emb.at[0].set(0.0)  # padding_idx=0 row
    w_ih = jax.random.uniform(ks[1], (2, 4 * H, input_dim), jnp.float32,
                              -scale, scale)
    w_hh = jax.random.uniform(ks[2], (2, 4 * H, H), jnp.float32, -scale, scale)
    b_ih = jax.random.uniform(ks[3], (2, 4 * H), jnp.float32, -scale, scale)
    b_hh = jax.random.uniform(ks[4], (2, 4 * H), jnp.float32, -scale, scale)
    w_out = jax.random.uniform(ks[5], (output_dim, 2 * H), jnp.float32,
                               -0.1, 0.1)
    b_out = jax.random.uniform(ks[6], (output_dim,), jnp.float32, -0.1, 0.1)

    # Reference layouts.
    w_ih_t = jnp.transpose(w_ih, (0, 2, 1))        # (2, E, 4H)
    w_hh_t = jnp.transpose(w_hh, (0, 2, 1))        # (2, H, 4H)
    lstm_bias = b_ih + b_hh                        # (2, 4H)

    # Kernel layouts (one-time preprocessing).
    # w_ih_cat: (E, 8H) columns [fwd i,f,g,o | bwd i,f,g,o]; b_cat: (8H,).
    w_ih_cat = jnp.concatenate([w_ih_t[0], w_ih_t[1]], axis=1)
    b_cat = jnp.concatenate([lstm_bias[0], lstm_bias[1]], axis=0)
    # whh_bd: (2H, 8H) block-diagonal, rows [h_fwd | h_bwd], columns
    # gate-major / direction-minor [i_f,i_b,f_f,f_b,g_f,g_b,o_f,o_b].
    zero = jnp.zeros((H, H), jnp.float32)
    cols = []
    for k in range(4):
        cols.append(jnp.concatenate(
            [w_hh_t[0][:, k * H:(k + 1) * H], zero], axis=0))
        cols.append(jnp.concatenate(
            [zero, w_hh_t[1][:, k * H:(k + 1) * H]], axis=0))
    whh_bd = jnp.concatenate(cols, axis=1)         # (2H, 8H)

    return {
        "emb": emb,
        "w_ih_t": w_ih_t,
        "w_hh_t": w_hh_t,
        "lstm_bias": lstm_bias,
        "w_ih_cat": w_ih_cat,
        "b_cat": b_cat,
        "whh_bd": whh_bd,
        "w_out_t": w_out.T,                        # (2H, O)
        "b_out": b_out,                            # (O,)
    }


# ---------------------------------- main -------------------------------------


if __name__ == "__main__":
    # Small config: vocab=50, input_dim=32, hidden_dim=32, num_layers=1,
    # output_dim=3, max_len=8, batch=4.
    vocab, input_dim, hidden_dim, output_dim, max_len, batch = 50, 32, 32, 3, 8, 4

    key = jax.random.PRNGKey(0)
    pkey, ikey, lkey = jax.random.split(key, 3)
    params = make_params(pkey, vocab, input_dim, hidden_dim, output_dim)

    sen_batch = jax.random.randint(ikey, (batch, max_len), 0, vocab,
                                   dtype=jnp.int32)
    sen_lengths = jnp.array([max_len, 5, 3, max_len], dtype=jnp.int32)

    out = jax.block_until_ready(
        jax.jit(blstm_forward)(params, sen_batch, sen_lengths))
    ref = jax.block_until_ready(
        jax.jit(blstm_forward_ref)(params, sen_batch, sen_lengths))

    assert out.shape == (batch, output_dim), out.shape
    assert jnp.allclose(out, ref, rtol=1e-4, atol=1e-4), (out, ref)
    print("KERNEL_OK")
</pallas_src>

<mosaic_0001>
module attributes {stable_mosaic.version = 11 : i64} {
  func.func @_bilstm_fused_kernel(%arg0: i32, %arg1: memref<8xi32, #tpu.memory_space<smem>>, %arg2: memref<8x8x256xf32, #tpu.memory_space<vmem>>, %arg3: memref<64x256xf32, #tpu.memory_space<vmem>>, %arg4: memref<8x64xf32, #tpu.memory_space<vmem>>) attributes {dimension_semantics = [#tpu.dimension_semantics<arbitrary>], iteration_bounds = array<i64: 1>, scalar_prefetch = 1 : i64, scratch_operands = 0 : i64, tpu.core_type = #tpu.core_type<tc>, window_params = [{pipeline_mode = #tpu.pipeline_mode<synchronous>, transform_indices = @transform_0, window_bounds = array<i64: 8, 8, 256>}, {pipeline_mode = #tpu.pipeline_mode<synchronous>, transform_indices = @transform_1, window_bounds = array<i64: 64, 256>}, {pipeline_mode = #tpu.pipeline_mode<synchronous>, transform_indices = @transform_2, window_bounds = array<i64: 8, 64>}]} {
    %c0 = arith.constant 0 : index
    %c0_0 = arith.constant 0 : index
    %0 = vector.load %arg3[%c0, %c0_0] : memref<64x256xf32, #tpu.memory_space<vmem>>, vector<64x256xf32>
    %1 = tpu.iota {dimensions = array<i32: 0>} : vector<8x64xi32>
    %c-1_i32 = arith.constant -1 : i32
    %2 = vector.broadcast %c-1_i32 : i32 to vector<8x64xi32>
    %c0_i32 = arith.constant 0 : i32
    %3 = vector.broadcast %c0_i32 : i32 to vector<8x64xi32>
    %4 = arith.cmpi eq, %1, %3 : vector<8x64xi32>
    %c0_1 = arith.constant 0 : index
    %5 = memref.load %arg1[%c0_1] : memref<8xi32, #tpu.memory_space<smem>>
    %6 = vector.broadcast %5 : i32 to vector<8x64xi32>
    %7 = arith.select %4, %6, %2 : vector<8x64xi1>, vector<8x64xi32>
    %c1_i32 = arith.constant 1 : i32
    %8 = vector.broadcast %c1_i32 : i32 to vector<8x64xi32>
    %9 = arith.cmpi eq, %1, %8 : vector<8x64xi32>
    %c1 = arith.constant 1 : index
    %10 = memref.load %arg1[%c1] : memref<8xi32, #tpu.memory_space<smem>>
    %11 = vector.broadcast %10 : i32 to vector<8x64xi32>
    %12 = arith.select %9, %11, %7 : vector<8x64xi1>, vector<8x64xi32>
    %c2_i32 = arith.constant 2 : i32
    %13 = vector.broadcast %c2_i32 : i32 to vector<8x64xi32>
    %14 = arith.cmpi eq, %1, %13 : vector<8x64xi32>
    %c2 = arith.constant 2 : index
    %15 = memref.load %arg1[%c2] : memref<8xi32, #tpu.memory_space<smem>>
    %16 = vector.broadcast %15 : i32 to vector<8x64xi32>
    %17 = arith.select %14, %16, %12 : vector<8x64xi1>, vector<8x64xi32>
    %c3_i32 = arith.constant 3 : i32
    %18 = vector.broadcast %c3_i32 : i32 to vector<8x64xi32>
    %19 = arith.cmpi eq, %1, %18 : vector<8x64xi32>
    %c3 = arith.constant 3 : index
    %20 = memref.load %arg1[%c3] : memref<8xi32, #tpu.memory_space<smem>>
    %21 = vector.broadcast %20 : i32 to vector<8x64xi32>
    %22 = arith.select %19, %21, %17 : vector<8x64xi1>, vector<8x64xi32>
    %c4_i32 = arith.constant 4 : i32
    %23 = vector.broadcast %c4_i32 : i32 to vector<8x64xi32>
    %24 = arith.cmpi eq, %1, %23 : vector<8x64xi32>
    %c4 = arith.constant 4 : index
    %25 = memref.load %arg1[%c4] : memref<8xi32, #tpu.memory_space<smem>>
    %26 = vector.broadcast %25 : i32 to vector<8x64xi32>
    %27 = arith.select %24, %26, %22 : vector<8x64xi1>, vector<8x64xi32>
    %c5_i32 = arith.constant 5 : i32
    %28 = vector.broadcast %c5_i32 : i32 to vector<8x64xi32>
    %29 = arith.cmpi eq, %1, %28 : vector<8x64xi32>
    %c5 = arith.constant 5 : index
    %30 = memref.load %arg1[%c5] : memref<8xi32, #tpu.memory_space<smem>>
    %31 = vector.broadcast %30 : i32 to vector<8x64xi32>
    %32 = arith.select %29, %31, %27 : vector<8x64xi1>, vector<8x64xi32>
    %c6_i32 = arith.constant 6 : i32
    %33 = vector.broadcast %c6_i32 : i32 to vector<8x64xi32>
    %34 = arith.cmpi eq, %1, %33 : vector<8x64xi32>
    %c6 = arith.constant 6 : index
    %35 = memref.load %arg1[%c6] : memref<8xi32, #tpu.memory_space<smem>>
    %36 = vector.broadcast %35 : i32 to vector<8x64xi32>
    %37 = arith.select %34, %36, %32 : vector<8x64xi1>, vector<8x64xi32>
    %c7_i32 = arith.constant 7 : i32
    %38 = vector.broadcast %c7_i32 : i32 to vector<8x64xi32>
    %39 = arith.cmpi eq, %1, %38 : vector<8x64xi32>
    %c7 = arith.constant 7 : index
    %40 = memref.load %arg1[%c7] : memref<8xi32, #tpu.memory_space<smem>>
    %41 = vector.broadcast %40 : i32 to vector<8x64xi32>
    %42 = arith.select %39, %41, %37 : vector<8x64xi1>, vector<8x64xi32>
    %43 = tpu.iota {dimensions = array<i32: 1>} : vector<8x256xi32>
    %c128_i32 = arith.constant 128 : i32
    %44 = vector.broadcast %c128_i32 : i32 to vector<8x256xi32>
    %45 = arith.cmpi sge, %43, %44 : vector<8x256xi32>
    %c192_i32 = arith.constant 192 : i32
    %46 = vector.broadcast %c192_i32 : i32 to vector<8x256xi32>
    %47 = arith.cmpi slt, %43, %46 : vector<8x256xi32>
    %48 = arith.andi %45, %47 : vector<8x256xi1>
    %cst = arith.constant 0.000000e+00 : f32
    %49 = vector.broadcast %cst : f32 to vector<8x64xf32>
    %c0_i32_2 = arith.constant 0 : i32
    %50 = arith.index_cast %c0_i32_2 : i32 to index
    %c0_3 = arith.constant 0 : index
    %c0_4 = arith.constant 0 : index
    %51 = vector.load %arg2[%50, %c0_3, %c0_4] : memref<8x8x256xf32, #tpu.memory_space<vmem>>, vector<1x8x256xf32>
    %52 = vector.shape_cast %51 : vector<1x8x256xf32> to vector<8x256xf32>
    %cst_5 = arith.constant dense<0.000000e+00> : vector<8x256xf32>
    %53 = tpu.matmul %49, %0, %cst_5 {dimension_numbers = #tpu.dot_dimension_numbers<[1], [0], [0], [1], [0, 0, 1, 1], [], []>} : vector<8x64xf32>, vector<64x256xf32>, vector<8x256xf32> -> vector<8x256xf32>
    %54 = arith.addf %52, %53 : vector<8x256xf32>
    %cst_6 = arith.constant 5.000000e-01 : f32
    %55 = vector.broadcast %cst_6 : f32 to vector<8x256xf32>
    %56 = arith.mulf %55, %54 : vector<8x256xf32>
    %57 = arith.select %48, %54, %56 : vector<8x256xi1>, vector<8x256xf32>
    %58 = math.tanh %57 : vector<8x256xf32>
    %cst_7 = arith.constant 5.000000e-01 : f32
    %59 = vector.broadcast %cst_7 : f32 to vector<8x256xf32>
    %60 = arith.mulf %59, %58 : vector<8x256xf32>
    %cst_8 = arith.constant 5.000000e-01 : f32
    %61 = vector.broadcast %cst_8 : f32 to vector<8x256xf32>
    %62 = arith.addf %60, %61 : vector<8x256xf32>
    %63 = arith.select %48, %58, %62 : vector<8x256xi1>, vector<8x256xf32>
    %64 = vector.extract_strided_slice %63 {offsets = [0, 0], sizes = [8, 64], strides = [1, 1]} : vector<8x256xf32> to vector<8x64xf32>
    %65 = vector.extract_strided_slice %63 {offsets = [0, 64], sizes = [8, 64], strides = [1, 1]} : vector<8x256xf32> to vector<8x64xf32>
    %66 = vector.extract_strided_slice %63 {offsets = [0, 128], sizes = [8, 64], strides = [1, 1]} : vector<8x256xf32> to vector<8x64xf32>
    %67 = vector.extract_strided_slice %63 {offsets = [0, 192], sizes = [8, 64], strides = [1, 1]} : vector<8x256xf32> to vector<8x64xf32>
    %68 = arith.mulf %65, %49 : vector<8x64xf32>
    %69 = arith.mulf %64, %66 : vector<8x64xf32>
    %70 = arith.addf %68, %69 : vector<8x64xf32>
    %71 = math.tanh %70 : vector<8x64xf32>
    %72 = arith.mulf %67, %71 : vector<8x64xf32>
    %73 = vector.broadcast %c0_i32_2 : i32 to vector<8x64xi32>
    %74 = arith.cmpi eq, %73, %42 : vector<8x64xi32>
    %75 = arith.select %74, %72, %49 : vector<8x64xi1>, vector<8x64xf32>
    %c1_i32_9 = arith.constant 1 : i32
    %76 = arith.index_cast %c1_i32_9 : i32 to index
    %c0_10 = arith.constant 0 : index
    %c0_11 = arith.constant 0 : index
    %77 = vector.load %arg2[%76, %c0_10, %c0_11] : memref<8x8x256xf32, #tpu.memory_space<vmem>>, vector<1x8x256xf32>
    %78 = vector.shape_cast %77 : vector<1x8x256xf32> to vector<8x256xf32>
    %cst_12 = arith.constant dense<0.000000e+00> : vector<8x256xf32>
    %79 = tpu.matmul %72, %0, %cst_12 {dimension_numbers = #tpu.dot_dimension_numbers<[1], [0], [0], [1], [0, 0, 1, 1], [], []>} : vector<8x64xf32>, vector<64x256xf32>, vector<8x256xf32> -> vector<8x256xf32>
    %80 = arith.addf %78, %79 : vector<8x256xf32>
    %cst_13 = arith.constant 5.000000e-01 : f32
    %81 = vector.broadcast %cst_13 : f32 to vector<8x256xf32>
    %82 = arith.mulf %81, %80 : vector<8x256xf32>
    %83 = arith.select %48, %80, %82 : vector<8x256xi1>, vector<8x256xf32>
    %84 = math.tanh %83 : vector<8x256xf32>
    %cst_14 = arith.constant 5.000000e-01 : f32
    %85 = vector.broadcast %cst_14 : f32 to vector<8x256xf32>
    %86 = arith.mulf %85, %84 : vector<8x256xf32>
    %cst_15 = arith.constant 5.000000e-01 : f32
    %87 = vector.broadcast %cst_15 : f32 to vector<8x256xf32>
    %88 = arith.addf %86, %87 : vector<8x256xf32>
    %89 = arith.select %48, %84, %88 : vector<8x256xi1>, vector<8x256xf32>
    %90 = vector.extract_strided_slice %89 {offsets = [0, 0], sizes = [8, 64], strides = [1, 1]} : vector<8x256xf32> to vector<8x64xf32>
    %91 = vector.extract_strided_slice %89 {offsets = [0, 64], sizes = [8, 64], strides = [1, 1]} : vector<8x256xf32> to vector<8x64xf32>
    %92 = vector.extract_strided_slice %89 {offsets = [0, 128], sizes = [8, 64], strides = [1, 1]} : vector<8x256xf32> to vector<8x64xf32>
    %93 = vector.extract_strided_slice %89 {offsets = [0, 192], sizes = [8, 64], strides = [1, 1]} : vector<8x256xf32> to vector<8x64xf32>
    %94 = arith.mulf %91, %70 : vector<8x64xf32>
    %95 = arith.mulf %90, %92 : vector<8x64xf32>
    %96 = arith.addf %94, %95 : vector<8x64xf32>
    %97 = math.tanh %96 : vector<8x64xf32>
    %98 = arith.mulf %93, %97 : vector<8x64xf32>
    %99 = vector.broadcast %c1_i32_9 : i32 to vector<8x64xi32>
    %100 = arith.cmpi eq, %99, %42 : vector<8x64xi32>
    %101 = arith.select %100, %98, %75 : vector<8x64xi1>, vector<8x64xf32>
    %c2_i32_16 = arith.constant 2 : i32
    %102 = arith.index_cast %c2_i32_16 : i32 to index
    %c0_17 = arith.constant 0 : index
    %c0_18 = arith.constant 0 : index
    %103 = vector.load %arg2[%102, %c0_17, %c0_18] : memref<8x8x256xf32, #tpu.memory_space<vmem>>, vector<1x8x256xf32>
    %104 = vector.shape_cast %103 : vector<1x8x256xf32> to vector<8x256xf32>
    %cst_19 = arith.constant dense<0.000000e+00> : vector<8x256xf32>
    %105 = tpu.matmul %98, %0, %cst_19 {dimension_numbers = #tpu.dot_dimension_numbers<[1], [0], [0], [1], [0, 0, 1, 1], [], []>} : vector<8x64xf32>, vector<64x256xf32>, vector<8x256xf32> -> vector<8x256xf32>
    %106 = arith.addf %104, %105 : vector<8x256xf32>
    %cst_20 = arith.constant 5.000000e-01 : f32
    %107 = vector.broadcast %cst_20 : f32 to vector<8x256xf32>
    %108 = arith.mulf %107, %106 : vector<8x256xf32>
    %109 = arith.select %48, %106, %108 : vector<8x256xi1>, vector<8x256xf32>
    %110 = math.tanh %109 : vector<8x256xf32>
    %cst_21 = arith.constant 5.000000e-01 : f32
    %111 = vector.broadcast %cst_21 : f32 to vector<8x256xf32>
    %112 = arith.mulf %111, %110 : vector<8x256xf32>
    %cst_22 = arith.constant 5.000000e-01 : f32
    %113 = vector.broadcast %cst_22 : f32 to vector<8x256xf32>
    %114 = arith.addf %112, %113 : vector<8x256xf32>
    %115 = arith.select %48, %110, %114 : vector<8x256xi1>, vector<8x256xf32>
    %116 = vector.extract_strided_slice %115 {offsets = [0, 0], sizes = [8, 64], strides = [1, 1]} : vector<8x256xf32> to vector<8x64xf32>
    %117 = vector.extract_strided_slice %115 {offsets = [0, 64], sizes = [8, 64], strides = [1, 1]} : vector<8x256xf32> to vector<8x64xf32>
    %118 = vector.extract_strided_slice %115 {offsets = [0, 128], sizes = [8, 64], strides = [1, 1]} : vector<8x256xf32> to vector<8x64xf32>
    %119 = vector.extract_strided_slice %115 {offsets = [0, 192], sizes = [8, 64], strides = [1, 1]} : vector<8x256xf32> to vector<8x64xf32>
    %120 = arith.mulf %117, %96 : vector<8x64xf32>
    %121 = arith.mulf %116, %118 : vector<8x64xf32>
    %122 = arith.addf %120, %121 : vector<8x64xf32>
    %123 = math.tanh %122 : vector<8x64xf32>
    %124 = arith.mulf %119, %123 : vector<8x64xf32>
    %125 = vector.broadcast %c2_i32_16 : i32 to vector<8x64xi32>
    %126 = arith.cmpi eq, %125, %42 : vector<8x64xi32>
    %127 = arith.select %126, %124, %101 : vector<8x64xi1>, vector<8x64xf32>
    %c3_i32_23 = arith.constant 3 : i32
    %128 = arith.index_cast %c3_i32_23 : i32 to index
    %c0_24 = arith.constant 0 : index
    %c0_25 = arith.constant 0 : index
    %129 = vector.load %arg2[%128, %c0_24, %c0_25] : memref<8x8x256xf32, #tpu.memory_space<vmem>>, vector<1x8x256xf32>
    %130 = vector.shape_cast %129 : vector<1x8x256xf32> to vector<8x256xf32>
    %cst_26 = arith.constant dense<0.000000e+00> : vector<8x256xf32>
    %131 = tpu.matmul %124, %0, %cst_26 {dimension_numbers = #tpu.dot_dimension_numbers<[1], [0], [0], [1], [0, 0, 1, 1], [], []>} : vector<8x64xf32>, vector<64x256xf32>, vector<8x256xf32> -> vector<8x256xf32>
    %132 = arith.addf %130, %131 : vector<8x256xf32>
    %cst_27 = arith.constant 5.000000e-01 : f32
    %133 = vector.broadcast %cst_27 : f32 to vector<8x256xf32>
    %134 = arith.mulf %133, %132 : vector<8x256xf32>
    %135 = arith.select %48, %132, %134 : vector<8x256xi1>, vector<8x256xf32>
    %136 = math.tanh %135 : vector<8x256xf32>
    %cst_28 = arith.constant 5.000000e-01 : f32
    %137 = vector.broadcast %cst_28 : f32 to vector<8x256xf32>
    %138 = arith.mulf %137, %136 : vector<8x256xf32>
    %cst_29 = arith.constant 5.000000e-01 : f32
    %139 = vector.broadcast %cst_29 : f32 to vector<8x256xf32>
    %140 = arith.addf %138, %139 : vector<8x256xf32>
    %141 = arith.select %48, %136, %140 : vector<8x256xi1>, vector<8x256xf32>
    %142 = vector.extract_strided_slice %141 {offsets = [0, 0], sizes = [8, 64], strides = [1, 1]} : vector<8x256xf32> to vector<8x64xf32>
    %143 = vector.extract_strided_slice %141 {offsets = [0, 64], sizes = [8, 64], strides = [1, 1]} : vector<8x256xf32> to vector<8x64xf32>
    %144 = vector.extract_strided_slice %141 {offsets = [0, 128], sizes = [8, 64], strides = [1, 1]} : vector<8x256xf32> to vector<8x64xf32>
    %145 = vector.extract_strided_slice %141 {offsets = [0, 192], sizes = [8, 64], strides = [1, 1]} : vector<8x256xf32> to vector<8x64xf32>
    %146 = arith.mulf %143, %122 : vector<8x64xf32>
    %147 = arith.mulf %142, %144 : vector<8x64xf32>
    %148 = arith.addf %146, %147 : vector<8x64xf32>
    %149 = math.tanh %148 : vector<8x64xf32>
    %150 = arith.mulf %145, %149 : vector<8x64xf32>
    %151 = vector.broadcast %c3_i32_23 : i32 to vector<8x64xi32>
    %152 = arith.cmpi eq, %151, %42 : vector<8x64xi32>
    %153 = arith.select %152, %150, %127 : vector<8x64xi1>, vector<8x64xf32>
    %c4_i32_30 = arith.constant 4 : i32
    %154 = arith.index_cast %c4_i32_30 : i32 to index
    %c0_31 = arith.constant 0 : index
    %c0_32 = arith.constant 0 : index
    %155 = vector.load %arg2[%154, %c0_31, %c0_32] : memref<8x8x256xf32, #tpu.memory_space<vmem>>, vector<1x8x256xf32>
    %156 = vector.shape_cast %155 : vector<1x8x256xf32> to vector<8x256xf32>
    %cst_33 = arith.constant dense<0.000000e+00> : vector<8x256xf32>
    %157 = tpu.matmul %150, %0, %cst_33 {dimension_numbers = #tpu.dot_dimension_numbers<[1], [0], [0], [1], [0, 0, 1, 1], [], []>} : vector<8x64xf32>, vector<64x256xf32>, vector<8x256xf32> -> vector<8x256xf32>
    %158 = arith.addf %156, %157 : vector<8x256xf32>
    %cst_34 = arith.constant 5.000000e-01 : f32
    %159 = vector.broadcast %cst_34 : f32 to vector<8x256xf32>
    %160 = arith.mulf %159, %158 : vector<8x256xf32>
    %161 = arith.select %48, %158, %160 : vector<8x256xi1>, vector<8x256xf32>
    %162 = math.tanh %161 : vector<8x256xf32>
    %cst_35 = arith.constant 5.000000e-01 : f32
    %163 = vector.broadcast %cst_35 : f32 to vector<8x256xf32>
    %164 = arith.mulf %163, %162 : vector<8x256xf32>
    %cst_36 = arith.constant 5.000000e-01 : f32
    %165 = vector.broadcast %cst_36 : f32 to vector<8x256xf32>
    %166 = arith.addf %164, %165 : vector<8x256xf32>
    %167 = arith.select %48, %162, %166 : vector<8x256xi1>, vector<8x256xf32>
    %168 = vector.extract_strided_slice %167 {offsets = [0, 0], sizes = [8, 64], strides = [1, 1]} : vector<8x256xf32> to vector<8x64xf32>
    %169 = vector.extract_strided_slice %167 {offsets = [0, 64], sizes = [8, 64], strides = [1, 1]} : vector<8x256xf32> to vector<8x64xf32>
    %170 = vector.extract_strided_slice %167 {offsets = [0, 128], sizes = [8, 64], strides = [1, 1]} : vector<8x256xf32> to vector<8x64xf32>
    %171 = vector.extract_strided_slice %167 {offsets = [0, 192], sizes = [8, 64], strides = [1, 1]} : vector<8x256xf32> to vector<8x64xf32>
    %172 = arith.mulf %169, %148 : vector<8x64xf32>
    %173 = arith.mulf %168, %170 : vector<8x64xf32>
    %174 = arith.addf %172, %173 : vector<8x64xf32>
    %175 = math.tanh %174 : vector<8x64xf32>
    %176 = arith.mulf %171, %175 : vector<8x64xf32>
    %177 = vector.broadcast %c4_i32_30 : i32 to vector<8x64xi32>
    %178 = arith.cmpi eq, %177, %42 : vector<8x64xi32>
    %179 = arith.select %178, %176, %153 : vector<8x64xi1>, vector<8x64xf32>
    %c5_i32_37 = arith.constant 5 : i32
    %180 = arith.index_cast %c5_i32_37 : i32 to index
    %c0_38 = arith.constant 0 : index
    %c0_39 = arith.constant 0 : index
    %181 = vector.load %arg2[%180, %c0_38, %c0_39] : memref<8x8x256xf32, #tpu.memory_space<vmem>>, vector<1x8x256xf32>
    %182 = vector.shape_cast %181 : vector<1x8x256xf32> to vector<8x256xf32>
    %cst_40 = arith.constant dense<0.000000e+00> : vector<8x256xf32>
    %183 = tpu.matmul %176, %0, %cst_40 {dimension_numbers = #tpu.dot_dimension_numbers<[1], [0], [0], [1], [0, 0, 1, 1], [], []>} : vector<8x64xf32>, vector<64x256xf32>, vector<8x256xf32> -> vector<8x256xf32>
    %184 = arith.addf %182, %183 : vector<8x256xf32>
    %cst_41 = arith.constant 5.000000e-01 : f32
    %185 = vector.broadcast %cst_41 : f32 to vector<8x256xf32>
    %186 = arith.mulf %185, %184 : vector<8x256xf32>
    %187 = arith.select %48, %184, %186 : vector<8x256xi1>, vector<8x256xf32>
    %188 = math.tanh %187 : vector<8x256xf32>
    %cst_42 = arith.constant 5.000000e-01 : f32
    %189 = vector.broadcast %cst_42 : f32 to vector<8x256xf32>
    %190 = arith.mulf %189, %188 : vector<8x256xf32>
    %cst_43 = arith.constant 5.000000e-01 : f32
    %191 = vector.broadcast %cst_43 : f32 to vector<8x256xf32>
    %192 = arith.addf %190, %191 : vector<8x256xf32>
    %193 = arith.select %48, %188, %192 : vector<8x256xi1>, vector<8x256xf32>
    %194 = vector.extract_strided_slice %193 {offsets = [0, 0], sizes = [8, 64], strides = [1, 1]} : vector<8x256xf32> to vector<8x64xf32>
    %195 = vector.extract_strided_slice %193 {offsets = [0, 64], sizes = [8, 64], strides = [1, 1]} : vector<8x256xf32> to vector<8x64xf32>
    %196 = vector.extract_strided_slice %193 {offsets = [0, 128], sizes = [8, 64], strides = [1, 1]} : vector<8x256xf32> to vector<8x64xf32>
    %197 = vector.extract_strided_slice %193 {offsets = [0, 192], sizes = [8, 64], strides = [1, 1]} : vector<8x256xf32> to vector<8x64xf32>
    %198 = arith.mulf %195, %174 : vector<8x64xf32>
    %199 = arith.mulf %194, %196 : vector<8x64xf32>
    %200 = arith.addf %198, %199 : vector<8x64xf32>
    %201 = math.tanh %200 : vector<8x64xf32>
    %202 = arith.mulf %197, %201 : vector<8x64xf32>
    %203 = vector.broadcast %c5_i32_37 : i32 to vector<8x64xi32>
    %204 = arith.cmpi eq, %203, %42 : vector<8x64xi32>
    %205 = arith.select %204, %202, %179 : vector<8x64xi1>, vector<8x64xf32>
    %c6_i32_44 = arith.constant 6 : i32
    %206 = arith.index_cast %c6_i32_44 : i32 to index
    %c0_45 = arith.constant 0 : index
    %c0_46 = arith.constant 0 : index
    %207 = vector.load %arg2[%206, %c0_45, %c0_46] : memref<8x8x256xf32, #tpu.memory_space<vmem>>, vector<1x8x256xf32>
    %208 = vector.shape_cast %207 : vector<1x8x256xf32> to vector<8x256xf32>
    %cst_47 = arith.constant dense<0.000000e+00> : vector<8x256xf32>
    %209 = tpu.matmul %202, %0, %cst_47 {dimension_numbers = #tpu.dot_dimension_numbers<[1], [0], [0], [1], [0, 0, 1, 1], [], []>} : vector<8x64xf32>, vector<64x256xf32>, vector<8x256xf32> -> vector<8x256xf32>
    %210 = arith.addf %208, %209 : vector<8x256xf32>
    %cst_48 = arith.constant 5.000000e-01 : f32
    %211 = vector.broadcast %cst_48 : f32 to vector<8x256xf32>
    %212 = arith.mulf %211, %210 : vector<8x256xf32>
    %213 = arith.select %48, %210, %212 : vector<8x256xi1>, vector<8x256xf32>
    %214 = math.tanh %213 : vector<8x256xf32>
    %cst_49 = arith.constant 5.000000e-01 : f32
    %215 = vector.broadcast %cst_49 : f32 to vector<8x256xf32>
    %216 = arith.mulf %215, %214 : vector<8x256xf32>
    %cst_50 = arith.constant 5.000000e-01 : f32
    %217 = vector.broadcast %cst_50 : f32 to vector<8x256xf32>
    %218 = arith.addf %216, %217 : vector<8x256xf32>
    %219 = arith.select %48, %214, %218 : vector<8x256xi1>, vector<8x256xf32>
    %220 = vector.extract_strided_slice %219 {offsets = [0, 0], sizes = [8, 64], strides = [1, 1]} : vector<8x256xf32> to vector<8x64xf32>
    %221 = vector.extract_strided_slice %219 {offsets = [0, 64], sizes = [8, 64], strides = [1, 1]} : vector<8x256xf32> to vector<8x64xf32>
    %222 = vector.extract_strided_slice %219 {offsets = [0, 128], sizes = [8, 64], strides = [1, 1]} : vector<8x256xf32> to vector<8x64xf32>
    %223 = vector.extract_strided_slice %219 {offsets = [0, 192], sizes = [8, 64], strides = [1, 1]} : vector<8x256xf32> to vector<8x64xf32>
    %224 = arith.mulf %221, %200 : vector<8x64xf32>
    %225 = arith.mulf %220, %222 : vector<8x64xf32>
    %226 = arith.addf %224, %225 : vector<8x64xf32>
    %227 = math.tanh %226 : vector<8x64xf32>
    %228 = arith.mulf %223, %227 : vector<8x64xf32>
    %229 = vector.broadcast %c6_i32_44 : i32 to vector<8x64xi32>
    %230 = arith.cmpi eq, %229, %42 : vector<8x64xi32>
    %231 = arith.select %230, %228, %205 : vector<8x64xi1>, vector<8x64xf32>
    %c7_i32_51 = arith.constant 7 : i32
    %232 = arith.index_cast %c7_i32_51 : i32 to index
    %c0_52 = arith.constant 0 : index
    %c0_53 = arith.constant 0 : index
    %233 = vector.load %arg2[%232, %c0_52, %c0_53] : memref<8x8x256xf32, #tpu.memory_space<vmem>>, vector<1x8x256xf32>
    %234 = vector.shape_cast %233 : vector<1x8x256xf32> to vector<8x256xf32>
    %cst_54 = arith.constant dense<0.000000e+00> : vector<8x256xf32>
    %235 = tpu.matmul %228, %0, %cst_54 {dimension_numbers = #tpu.dot_dimension_numbers<[1], [0], [0], [1], [0, 0, 1, 1], [], []>} : vector<8x64xf32>, vector<64x256xf32>, vector<8x256xf32> -> vector<8x256xf32>
    %236 = arith.addf %234, %235 : vector<8x256xf32>
    %cst_55 = arith.constant 5.000000e-01 : f32
    %237 = vector.broadcast %cst_55 : f32 to vector<8x256xf32>
    %238 = arith.mulf %237, %236 : vector<8x256xf32>
    %239 = arith.select %48, %236, %238 : vector<8x256xi1>, vector<8x256xf32>
    %240 = math.tanh %239 : vector<8x256xf32>
    %cst_56 = arith.constant 5.000000e-01 : f32
    %241 = vector.broadcast %cst_56 : f32 to vector<8x256xf32>
    %242 = arith.mulf %241, %240 : vector<8x256xf32>
    %cst_57 = arith.constant 5.000000e-01 : f32
    %243 = vector.broadcast %cst_57 : f32 to vector<8x256xf32>
    %244 = arith.addf %242, %243 : vector<8x256xf32>
    %245 = arith.select %48, %240, %244 : vector<8x256xi1>, vector<8x256xf32>
    %246 = vector.extract_strided_slice %245 {offsets = [0, 0], sizes = [8, 64], strides = [1, 1]} : vector<8x256xf32> to vector<8x64xf32>
    %247 = vector.extract_strided_slice %245 {offsets = [0, 64], sizes = [8, 64], strides = [1, 1]} : vector<8x256xf32> to vector<8x64xf32>
    %248 = vector.extract_strided_slice %245 {offsets = [0, 128], sizes = [8, 64], strides = [1, 1]} : vector<8x256xf32> to vector<8x64xf32>
    %249 = vector.extract_strided_slice %245 {offsets = [0, 192], sizes = [8, 64], strides = [1, 1]} : vector<8x256xf32> to vector<8x64xf32>
    %250 = arith.mulf %247, %226 : vector<8x64xf32>
    %251 = arith.mulf %246, %248 : vector<8x64xf32>
    %252 = arith.addf %250, %251 : vector<8x64xf32>
    %253 = math.tanh %252 : vector<8x64xf32>
    %254 = arith.mulf %249, %253 : vector<8x64xf32>
    %255 = vector.broadcast %c7_i32_51 : i32 to vector<8x64xi32>
    %256 = arith.cmpi eq, %255, %42 : vector<8x64xi32>
    %257 = arith.select %256, %254, %231 : vector<8x64xi1>, vector<8x64xf32>
    %c8_i32 = arith.constant 8 : i32
    %258 = tpu.iota {dimensions = array<i32: 1>} : vector<8x64xi32>
    %c32_i32 = arith.constant 32 : i32
    %259 = vector.broadcast %c32_i32 : i32 to vector<8x64xi32>
    %260 = arith.cmpi slt, %258, %259 : vector<8x64xi32>
    %261 = arith.select %260, %257, %254 : vector<8x64xi1>, vector<8x64xf32>
    %c0_58 = arith.constant 0 : index
    %c0_59 = arith.constant 0 : index
    %262 = vector.load %arg4[%c0_58, %c0_59] : memref<8x64xf32, #tpu.memory_space<vmem>>, vector<8x64xf32>
    tpu.vector_store %arg4[%c0_58, %c0_59], %261 {strides = array<i32>} : memref<8x64xf32, #tpu.memory_space<vmem>>, vector<8x64xf32>,
    return
  }
  func.func @transform_0(%arg0: i32, %arg1: memref<8xi32, #tpu.memory_space<smem>>) -> (i32, i32, i32) {
    %c0_i32 = arith.constant 0 : i32
    %c0_i32_0 = arith.constant 0 : i32
    %c0_i32_1 = arith.constant 0 : i32
    %c0_i32_2 = arith.constant 0 : i32
    return %c0_i32, %c0_i32_0, %c0_i32_1 : i32, i32, i32
  }
  func.func @transform_1(%arg0: i32, %arg1: memref<8xi32, #tpu.memory_space<smem>>) -> (i32, i32) {
    %c0_i32 = arith.constant 0 : i32
    %c0_i32_0 = arith.constant 0 : i32
    %c0_i32_1 = arith.constant 0 : i32
    return %c0_i32, %c0_i32_0 : i32, i32
  }
  func.func @transform_2(%arg0: i32, %arg1: memref<8xi32, #tpu.memory_space<smem>>) -> (i32, i32) {
    %c0_i32 = arith.constant 0 : i32
    %c0_i32_0 = arith.constant 0 : i32
    %c0_i32_1 = arith.constant 0 : i32
    return %c0_i32, %c0_i32_0 : i32, i32
  }
}

</mosaic_0001>

<llo_original>
// kernel: blstm_forward.1
$region0: #{blstm_forward.1}
  #allocation0 [shape = 'u32[]', space=smem, size = 0x4, offset = 0x4, fixed_abs, tag = 'smem constant byte address 0x4 - core index']
  #allocation1 [shape = 'u32[144,128]{1,0:T(1,128)}', space=vmem, size = 0x12000, scoped, tag = 'internal scratch']
  #allocation2 [shape = 's32[1]{0}', space=sflag, size = 0x4, scoped, tag = 'scoped memory for blstm_forward.1']
  #allocation3 [shape = 'u8[512]{0}', space=smem, size = 0x200, scoped, tag = 'prefetched SMEM operand 0']
  %s0 = inlined_call_operand.vmem [shape: s32[8], index: 0, kind: input, shape index: {}]
  %s1 = inlined_call_operand.vmem [shape: f32[8,8,256], index: 1, kind: input, shape index: {}]
  %s2 = inlined_call_operand.vmem [shape: f32[64,256], index: 2, kind: input, shape index: {}]
  %s3 = inlined_call_operand.vmem [shape: f32[8,64], index: 3, kind: output, shape index: {}]
  %s4 = sld [smem:[#allocation0]]
  $region18: #{blstm_forward.1} parent=0
    _
  %s6 = ssub.s32 1, %s4
  %s7 = scalar_select 0, %s6, %s4
  %s8 = sshll.u32 %s0, 4
  %s9 = int_to_ptr.vmem [resolvable:$true] %s8
  %11 = dma.vmem_to_smem %s9, 16, [#allocation3], [#allocation2]
  %12 = dma.done [#allocation2], 16
  %13 = sfence
  // Predicated region
  $region2: #{blstm_forward.1} parent=0 // pred_check
    _
  $region3: #{blstm_forward.1} parent=0 // pred_check_branch
    %15 = sbr.rel (0) target = $region5
  $region4: #{blstm_forward.1} parent=0 // pred_region
    _
  $region5: #{blstm_forward.1} parent=0 // pred_fallthru
    _
  // Predicated region
  $region6: #{blstm_forward.1} parent=0 // pred_check
    _
  $region7: #{blstm_forward.1} parent=0 // pred_check_branch
    %17 = sbr.rel (0) target = $region9
  $region8: #{blstm_forward.1} parent=0 // pred_region
    _
  $region9: #{blstm_forward.1} parent=0 // pred_fallthru
    _
  %v18 = vld [vmem:[%s2] sm:$0xff]
  %v19 = vld [vmem:[%s2 + $0x8] sm:$0xff]
  %v20 = vld [vmem:[%s2 + $0x10] sm:$0xff]
  %v21 = vld [vmem:[%s2 + $0x18] sm:$0xff]
  %v22 = vld [vmem:[%s2 + $0x20] sm:$0xff]
  %v23 = vld [vmem:[%s2 + $0x28] sm:$0xff]
  %v24 = vld [vmem:[%s2 + $0x30] sm:$0xff]
  %v25 = vld [vmem:[%s2 + $0x38] sm:$0xff]
  %v26 = vld [vmem:[%s2 + $0x40] sm:$0xff]
  %v27 = vld [vmem:[%s2 + $0x48] sm:$0xff]
  %v28 = vld [vmem:[%s2 + $0x50] sm:$0xff]
  %v29 = vld [vmem:[%s2 + $0x58] sm:$0xff]
  %v30 = vld [vmem:[%s2 + $0x60] sm:$0xff]
  %v31 = vld [vmem:[%s2 + $0x68] sm:$0xff]
  %v32 = vld [vmem:[%s2 + $0x70] sm:$0xff]
  %v33 = vld [vmem:[%s2 + $0x78] sm:$0xff]
  %v34 = vlaneseq
  %v35 = vshrl.u32 %v34, 7
  %vm36 = vcmp.eq.s32.totalorder %v35, 0
  %s37 = sld [smem:[#allocation3]]
  %v38 = vstv %s37
  %v39 = vsel %vm36, %v38, 4294967295
  %vm40 = vcmp.eq.s32.totalorder %v35, 1
  %s41 = sld [smem:[#allocation3 + $0x1]]
  %v42 = vstv %s41
  %v43 = vsel %vm40, %v42, %v39
  %vm44 = vcmp.eq.s32.totalorder %v35, 2
  %s45 = sld [smem:[#allocation3 + $0x2]]
  %v46 = vstv %s45
  %v47 = vsel %vm44, %v46, %v43
  %vm48 = vcmp.eq.s32.totalorder %v35, 3
  %s49 = sld [smem:[#allocation3 + $0x3]]
  %v50 = vstv %s49
  %v51 = vsel %vm48, %v50, %v47
  %vm52 = vcmp.eq.s32.totalorder %v35, 4
  %s53 = sld [smem:[#allocation3 + $0x4]]
  %v54 = vstv %s53
  %v55 = vsel %vm52, %v54, %v51
  %vm56 = vcmp.eq.s32.totalorder %v35, 5
  %s57 = sld [smem:[#allocation3 + $0x5]]
  %v58 = vstv %s57
  %v59 = vsel %vm56, %v58, %v55
  %vm60 = vcmp.eq.s32.totalorder %v35, 6
  %s61 = sld [smem:[#allocation3 + $0x6]]
  %v62 = vstv %s61
  %v63 = vsel %vm60, %v62, %v59
  %vm64 = vcmp.eq.s32.totalorder %v35, 7
  %s65 = sld [smem:[#allocation3 + $0x7]]
  %v66 = vstv %s65
  %v67 = vsel %vm64, %v66, %v63
  %v68 = vlaneseq
  %v69 = vand.u32 %v68, 127
  %v70 = vadd.s32 %v69, 128
  %vm71 = vcmp.ge.s32.totalorder %v69, 128
  %vm72 = vcmp.ge.s32.totalorder %v70, 128
  %vm73 = vcmp.lt.s32.totalorder %v69, 192
  %vm74 = vcmp.lt.s32.totalorder %v70, 192
  %vm75 = vmand %vm71, %vm73
  %vm76 = vmand %vm72, %vm74
  %v77 = vld [vmem:[%s1] sm:$0xff]
  %v78 = vld [vmem:[%s1 + $0x8] sm:$0xff]
  %vm79 = vcmask 523264
  %v81 = vsel %vm79, 0.0, 0
  %83 = vmatprep.subr.mxu0 %v19
  %84 = vmatpush1.msra.mxu0 %v18
  %85 = vmatprep.subr.mxu0 %v21
  %86 = vmatpush1.msra.mxu0 %v20
  %87 = vmatprep.subr.mxu0 %v23
  %88 = vmatpush1.msra.mxu0 %v22
  %89 = vmatprep.subr.mxu0 %v25
  %90 = vmatpush1.msra.mxu0 %v24
  %91 = vmatprep.subr.mxu0 %v27
  %92 = vmatpush1.msra.mxu0 %v26
  %93 = vmatprep.subr.mxu0 %v29
  %94 = vmatpush1.msra.mxu0 %v28
  %95 = vmatprep.subr.mxu0 %v31
  %96 = vmatpush1.msra.mxu0 %v30
  %97 = vmatprep.subr.mxu0 %v33
  %98 = vmatpush1.msra.mxu0 %v32
  %99 = vmatprep.subr.mxu0 0.0
  %100 = vmatpush1.msra.mxu0 0.0
  %101 = vmatprep.subr.mxu0 0.0
  %102 = vmatpush1.msra.mxu0 0.0
  %103 = vmatprep.subr.mxu0 0.0
  %104 = vmatpush1.msra.mxu0 0.0
  %105 = vmatprep.subr.mxu0 0.0
  %106 = vmatpush1.msra.mxu0 0.0
  %107 = vmatprep.subr.mxu0 0.0
  %108 = vmatpush1.msra.mxu0 0.0
  %109 = vmatprep.subr.mxu0 0.0
  %110 = vmatpush1.msra.mxu0 0.0
  %111 = vmatprep.subr.mxu0 0.0
  %112 = vmatpush1.msra.mxu0 0.0
  %113 = vmatprep.subr.mxu0 0.0
  %114 = vmatpush1.msra.mxu0 0.0
  %115 = vmatprep.subr.mxu0 0.0
  %116 = vmatpush1.msra.mxu0 0.0
  %117 = vmatprep.subr.mxu0 0.0
  %118 = vmatpush1.msra.mxu0 0.0
  %119 = vmatprep.subr.mxu0 0.0
  %120 = vmatpush1.msra.mxu0 0.0
  %121 = vmatprep.subr.mxu0 0.0
  %122 = vmatpush1.msra.mxu0 0.0
  %123 = vmatprep.subr.mxu0 0.0
  %124 = vmatpush1.msra.mxu0 0.0
  %125 = vmatprep.subr.mxu0 0.0
  %126 = vmatpush1.msra.mxu0 0.0
  %127 = vmatprep.subr.mxu0 0.0
  %128 = vmatpush1.msra.mxu0 0.0
  %129 = vmatprep.subr.mxu0 0.0
  %130 = vmatpush1.msra.mxu0 0.0
  %131 = vmatprep.subr.mxu0 0.0
  %132 = vmatpush1.msra.mxu0 0.0
  %133 = vmatprep.subr.mxu0 0.0
  %134 = vmatpush1.msra.mxu0 0.0
  %135 = vmatprep.subr.mxu0 0.0
  %136 = vmatpush1.msra.mxu0 0.0
  %137 = vmatprep.subr.mxu0 0.0
  %138 = vmatpush1.msra.mxu0 0.0
  %139 = vmatprep.subr.mxu0 0.0
  %140 = vmatpush1.msra.mxu0 0.0
  %141 = vmatprep.subr.mxu0 0.0
  %142 = vmatpush1.msra.mxu0 0.0
  %143 = vmatprep.subr.mxu0 0.0
  %144 = vmatpush1.msra.mxu0 0.0
  %145 = vmatprep.subr.mxu0 0.0
  %146 = vmatpush1.msra.mxu0 0.0
  %147 = vmatprep.mubr.f32.mxu0 0.0
  %148 = vmatmul.mubr.f32.gmra.mrb[0].mxu0 %v81
  %v149 = vpop.f32.mrb[0].mxu0
  %v150 = vadd.f32 0.0, %v149
  %v151 = vpop.f32.mrb[0].mxu0
  %v152 = vadd.f32 0.0, %v151
  %153 = vdwg.mxu0
  %v154 = vadd.f32 %v77, %v150
  %v155 = vadd.f32 %v78, %v152
  %v156 = vmul.f32 %v154, 0.5
  %v157 = vmul.f32 %v155, 0.5
  %v158 = vsel %vm75, %v154, %v156
  %v159 = vsel %vm76, %v155, %v157
  %v160 = vtanh.pop %v158
  %v161 = vtanh.pop %v159
  %v162 = vmul.f32 %v160, 0.5
  %v163 = vmul.f32 %v161, 0.5
  %v164 = vadd.f32 %v162, 0.5
  %v165 = vadd.f32 %v163, 0.5
  %v166 = vsel %vm75, %v160, %v164
  %v167 = vsel %vm76, %v161, %v165
  %v168 = vmul.f32 %v166, 0.0
  %v169 = vmul.f32 %v166, %v167
  %171 = vrot.lane.b32.xlu0 %v169, 64
  %v172 = vpop.permute.xlu0 %171
  %v174 = vadd.f32 %v168, %v172
  %v175 = vtanh.pop %v174
  %v176 = vmul.f32 %v167, %v175
  %vm177 = vcmp.eq.s32.totalorder %v67, 0
  %v178 = vsel %vm177, %v176, 0.0
  %s179 = scalar_lea.vmem %s1, 16
  %v180 = vld [vmem:[%s179] sm:$0xff]
  %v181 = vld [vmem:[%s179 + $0x8] sm:$0xff]
  %183 = vrot.lane.b32.xlu0 %v176, 64
  %v184 = vpop.permute.xlu0 %183
  %v185 = vsel %vm79, %v184, 0
  %187 = vmatprep.subr.mxu0 %v19
  %188 = vmatpush1.msra.mxu0 %v18
  %189 = vmatprep.subr.mxu0 %v21
  %190 = vmatpush1.msra.mxu0 %v20
  %191 = vmatprep.subr.mxu0 %v23
  %192 = vmatpush1.msra.mxu0 %v22
  %193 = vmatprep.subr.mxu0 %v25
  %194 = vmatpush1.msra.mxu0 %v24
  %195 = vmatprep.subr.mxu0 %v27
  %196 = vmatpush1.msra.mxu0 %v26
  %197 = vmatprep.subr.mxu0 %v29
  %198 = vmatpush1.msra.mxu0 %v28
  %199 = vmatprep.subr.mxu0 %v31
  %200 = vmatpush1.msra.mxu0 %v30
  %201 = vmatprep.subr.mxu0 %v33
  %202 = vmatpush1.msra.mxu0 %v32
  %203 = vmatprep.subr.mxu0 0.0
  %204 = vmatpush1.msra.mxu0 0.0
  %205 = vmatprep.subr.mxu0 0.0
  %206 = vmatpush1.msra.mxu0 0.0
  %207 = vmatprep.subr.mxu0 0.0
  %208 = vmatpush1.msra.mxu0 0.0
  %209 = vmatprep.subr.mxu0 0.0
  %210 = vmatpush1.msra.mxu0 0.0
  %211 = vmatprep.subr.mxu0 0.0
  %212 = vmatpush1.msra.mxu0 0.0
  %213 = vmatprep.subr.mxu0 0.0
  %214 = vmatpush1.msra.mxu0 0.0
  %215 = vmatprep.subr.mxu0 0.0
  %216 = vmatpush1.msra.mxu0 0.0
  %217 = vmatprep.subr.mxu0 0.0
  %218 = vmatpush1.msra.mxu0 0.0
  %219 = vmatprep.subr.mxu0 0.0
  %220 = vmatpush1.msra.mxu0 0.0
  %221 = vmatprep.subr.mxu0 0.0
  %222 = vmatpush1.msra.mxu0 0.0
  %223 = vmatprep.subr.mxu0 0.0
  %224 = vmatpush1.msra.mxu0 0.0
  %225 = vmatprep.subr.mxu0 0.0
  %226 = vmatpush1.msra.mxu0 0.0
  %227 = vmatprep.subr.mxu0 0.0
  %228 = vmatpush1.msra.mxu0 0.0
  %229 = vmatprep.subr.mxu0 0.0
  %230 = vmatpush1.msra.mxu0 0.0
  %231 = vmatprep.subr.mxu0 0.0
  %232 = vmatpush1.msra.mxu0 0.0
  %233 = vmatprep.subr.mxu0 0.0
  %234 = vmatpush1.msra.mxu0 0.0
  %235 = vmatprep.subr.mxu0 0.0
  %236 = vmatpush1.msra.mxu0 0.0
  %237 = vmatprep.subr.mxu0 0.0
  %238 = vmatpush1.msra.mxu0 0.0
  %239 = vmatprep.subr.mxu0 0.0
  %240 = vmatpush1.msra.mxu0 0.0
  %241 = vmatprep.subr.mxu0 0.0
  %242 = vmatpush1.msra.mxu0 0.0
  %243 = vmatprep.subr.mxu0 0.0
  %244 = vmatpush1.msra.mxu0 0.0
  %245 = vmatprep.subr.mxu0 0.0
  %246 = vmatpush1.msra.mxu0 0.0
  %247 = vmatprep.subr.mxu0 0.0
  %248 = vmatpush1.msra.mxu0 0.0
  %249 = vmatprep.subr.mxu0 0.0
  %250 = vmatpush1.msra.mxu0 0.0
  %251 = vmatprep.mubr.f32.mxu0 0.0
  %252 = vmatmul.mubr.f32.gmra.mrb[0].mxu0 %v185
  %v253 = vpop.f32.mrb[0].mxu0
  %v254 = vadd.f32 0.0, %v253
  %v255 = vpop.f32.mrb[0].mxu0
  %v256 = vadd.f32 0.0, %v255
  %257 = vdwg.mxu0
  %v258 = vadd.f32 %v180, %v254
  %v259 = vadd.f32 %v181, %v256
  %v260 = vmul.f32 %v258, 0.5
  %v261 = vmul.f32 %v259, 0.5
  %v262 = vsel %vm75, %v258, %v260
  %v263 = vsel %vm76, %v259, %v261
  %v264 = vtanh.pop %v262
  %v265 = vtanh.pop %v263
  %v266 = vmul.f32 %v264, 0.5
  %v267 = vmul.f32 %v265, 0.5
  %v268 = vadd.f32 %v266, 0.5
  %v269 = vadd.f32 %v267, 0.5
  %v270 = vsel %vm75, %v264, %v268
  %v271 = vsel %vm76, %v265, %v269
  %v272 = vmul.f32 %v270, %v174
  %v273 = vmul.f32 %v270, %v271
  %275 = vrot.lane.b32.xlu0 %v273, 64
  %v276 = vpop.permute.xlu0 %275
  %v278 = vadd.f32 %v272, %v276
  %v279 = vtanh.pop %v278
  %v280 = vmul.f32 %v271, %v279
  %vm281 = vcmp.eq.s32.totalorder %v67, 1
  %v282 = vsel %vm281, %v280, %v178
  %s283 = scalar_lea.vmem %s1, 32
  %v284 = vld [vmem:[%s283] sm:$0xff]
  %v285 = vld [vmem:[%s283 + $0x8] sm:$0xff]
  %287 = vrot.lane.b32.xlu0 %v280, 64
  %v288 = vpop.permute.xlu0 %287
  %v289 = vsel %vm79, %v288, 0
  %291 = vmatprep.subr.mxu0 %v19
  %292 = vmatpush1.msra.mxu0 %v18
  %293 = vmatprep.subr.mxu0 %v21
  %294 = vmatpush1.msra.mxu0 %v20
  %295 = vmatprep.subr.mxu0 %v23
  %296 = vmatpush1.msra.mxu0 %v22
  %297 = vmatprep.subr.mxu0 %v25
  %298 = vmatpush1.msra.mxu0 %v24
  %299 = vmatprep.subr.mxu0 %v27
  %300 = vmatpush1.msra.mxu0 %v26
  %301 = vmatprep.subr.mxu0 %v29
  %302 = vmatpush1.msra.mxu0 %v28
  %303 = vmatprep.subr.mxu0 %v31
  %304 = vmatpush1.msra.mxu0 %v30
  %305 = vmatprep.subr.mxu0 %v33
  %306 = vmatpush1.msra.mxu0 %v32
  %307 = vmatprep.subr.mxu0 0.0
  %308 = vmatpush1.msra.mxu0 0.0
  %309 = vmatprep.subr.mxu0 0.0
  %310 = vmatpush1.msra.mxu0 0.0
  %311 = vmatprep.subr.mxu0 0.0
  %312 = vmatpush1.msra.mxu0 0.0
  %313 = vmatprep.subr.mxu0 0.0
  %314 = vmatpush1.msra.mxu0 0.0
  %315 = vmatprep.subr.mxu0 0.0
  %316 = vmatpush1.msra.mxu0 0.0
  %317 = vmatprep.subr.mxu0 0.0
  %318 = vmatpush1.msra.mxu0 0.0
  %319 = vmatprep.subr.mxu0 0.0
  %320 = vmatpush1.msra.mxu0 0.0
  %321 = vmatprep.subr.mxu0 0.0
  %322 = vmatpush1.msra.mxu0 0.0
  %323 = vmatprep.subr.mxu0 0.0
  %324 = vmatpush1.msra.mxu0 0.0
  %325 = vmatprep.subr.mxu0 0.0
  %326 = vmatpush1.msra.mxu0 0.0
  %327 = vmatprep.subr.mxu0 0.0
  %328 = vmatpush1.msra.mxu0 0.0
  %329 = vmatprep.subr.mxu0 0.0
  %330 = vmatpush1.msra.mxu0 0.0
  %331 = vmatprep.subr.mxu0 0.0
  %332 = vmatpush1.msra.mxu0 0.0
  %333 = vmatprep.subr.mxu0 0.0
  %334 = vmatpush1.msra.mxu0 0.0
  %335 = vmatprep.subr.mxu0 0.0
  %336 = vmatpush1.msra.mxu0 0.0
  %337 = vmatprep.subr.mxu0 0.0
  %338 = vmatpush1.msra.mxu0 0.0
  %339 = vmatprep.subr.mxu0 0.0
  %340 = vmatpush1.msra.mxu0 0.0
  %341 = vmatprep.subr.mxu0 0.0
  %342 = vmatpush1.msra.mxu0 0.0
  %343 = vmatprep.subr.mxu0 0.0
  %344 = vmatpush1.msra.mxu0 0.0
  %345 = vmatprep.subr.mxu0 0.0
  %346 = vmatpush1.msra.mxu0 0.0
  %347 = vmatprep.subr.mxu0 0.0
  %348 = vmatpush1.msra.mxu0 0.0
  %349 = vmatprep.subr.mxu0 0.0
  %350 = vmatpush1.msra.mxu0 0.0
  %351 = vmatprep.subr.mxu0 0.0
  %352 = vmatpush1.msra.mxu0 0.0
  %353 = vmatprep.subr.mxu0 0.0
  %354 = vmatpush1.msra.mxu0 0.0
  %355 = vmatprep.mubr.f32.mxu0 0.0
  %356 = vmatmul.mubr.f32.gmra.mrb[0].mxu0 %v289
  %v357 = vpop.f32.mrb[0].mxu0
  %v358 = vadd.f32 0.0, %v357
  %v359 = vpop.f32.mrb[0].mxu0
  %v360 = vadd.f32 0.0, %v359
  %361 = vdwg.mxu0
  %v362 = vadd.f32 %v284, %v358
  %v363 = vadd.f32 %v285, %v360
  %v364 = vmul.f32 %v362, 0.5
  %v365 = vmul.f32 %v363, 0.5
  %v366 = vsel %vm75, %v362, %v364
  %v367 = vsel %vm76, %v363, %v365
  %v368 = vtanh.pop %v366
  %v369 = vtanh.pop %v367
  %v370 = vmul.f32 %v368, 0.5
  %v371 = vmul.f32 %v369, 0.5
  %v372 = vadd.f32 %v370, 0.5
  %v373 = vadd.f32 %v371, 0.5
  %v374 = vsel %vm75, %v368, %v372
  %v375 = vsel %vm76, %v369, %v373
  %v376 = vmul.f32 %v374, %v278
  %v377 = vmul.f32 %v374, %v375
  %379 = vrot.lane.b32.xlu0 %v377, 64
  %v380 = vpop.permute.xlu0 %379
  %v382 = vadd.f32 %v376, %v380
  %v383 = vtanh.pop %v382
  %v384 = vmul.f32 %v375, %v383
  %vm385 = vcmp.eq.s32.totalorder %v67, 2
  %v386 = vsel %vm385, %v384, %v282
  %s387 = scalar_lea.vmem %s1, 48
  %v388 = vld [vmem:[%s387] sm:$0xff]
  %v389 = vld [vmem:[%s387 + $0x8] sm:$0xff]
  %391 = vrot.lane.b32.xlu0 %v384, 64
  %v392 = vpop.permute.xlu0 %391
  %v393 = vsel %vm79, %v392, 0
  %395 = vmatprep.subr.mxu0 %v19
  %396 = vmatpush1.msra.mxu0 %v18
  %397 = vmatprep.subr.mxu0 %v21
  %398 = vmatpush1.msra.mxu0 %v20
  %399 = vmatprep.subr.mxu0 %v23
  %400 = vmatpush1.msra.mxu0 %v22
  %401 = vmatprep.subr.mxu0 %v25
  %402 = vmatpush1.msra.mxu0 %v24
  %403 = vmatprep.subr.mxu0 %v27
  %404 = vmatpush1.msra.mxu0 %v26
  %405 = vmatprep.subr.mxu0 %v29
  %406 = vmatpush1.msra.mxu0 %v28
  %407 = vmatprep.subr.mxu0 %v31
  %408 = vmatpush1.msra.mxu0 %v30
  %409 = vmatprep.subr.mxu0 %v33
  %410 = vmatpush1.msra.mxu0 %v32
  %411 = vmatprep.subr.mxu0 0.0
  %412 = vmatpush1.msra.mxu0 0.0
  %413 = vmatprep.subr.mxu0 0.0
  %414 = vmatpush1.msra.mxu0 0.0
  %415 = vmatprep.subr.mxu0 0.0
  %416 = vmatpush1.msra.mxu0 0.0
  %417 = vmatprep.subr.mxu0 0.0
  %418 = vmatpush1.msra.mxu0 0.0
  %419 = vmatprep.subr.mxu0 0.0
  %420 = vmatpush1.msra.mxu0 0.0
  %421 = vmatprep.subr.mxu0 0.0
  %422 = vmatpush1.msra.mxu0 0.0
  %423 = vmatprep.subr.mxu0 0.0
  %424 = vmatpush1.msra.mxu0 0.0
  %425 = vmatprep.subr.mxu0 0.0
  %426 = vmatpush1.msra.mxu0 0.0
  %427 = vmatprep.subr.mxu0 0.0
  %428 = vmatpush1.msra.mxu0 0.0
  %429 = vmatprep.subr.mxu0 0.0
  %430 = vmatpush1.msra.mxu0 0.0
  %431 = vmatprep.subr.mxu0 0.0
  %432 = vmatpush1.msra.mxu0 0.0
  %433 = vmatprep.subr.mxu0 0.0
  %434 = vmatpush1.msra.mxu0 0.0
  %435 = vmatprep.subr.mxu0 0.0
  %436 = vmatpush1.msra.mxu0 0.0
  %437 = vmatprep.subr.mxu0 0.0
  %438 = vmatpush1.msra.mxu0 0.0
  %439 = vmatprep.subr.mxu0 0.0
  %440 = vmatpush1.msra.mxu0 0.0
  %441 = vmatprep.subr.mxu0 0.0
  %442 = vmatpush1.msra.mxu0 0.0
  %443 = vmatprep.subr.mxu0 0.0
  %444 = vmatpush1.msra.mxu0 0.0
  %445 = vmatprep.subr.mxu0 0.0
  %446 = vmatpush1.msra.mxu0 0.0
  %447 = vmatprep.subr.mxu0 0.0
  %448 = vmatpush1.msra.mxu0 0.0
  %449 = vmatprep.subr.mxu0 0.0
  %450 = vmatpush1.msra.mxu0 0.0
  %451 = vmatprep.subr.mxu0 0.0
  %452 = vmatpush1.msra.mxu0 0.0
  %453 = vmatprep.subr.mxu0 0.0
  %454 = vmatpush1.msra.mxu0 0.0
  %455 = vmatprep.subr.mxu0 0.0
  %456 = vmatpush1.msra.mxu0 0.0
  %457 = vmatprep.subr.mxu0 0.0
  %458 = vmatpush1.msra.mxu0 0.0
  %459 = vmatprep.mubr.f32.mxu0 0.0
  %460 = vmatmul.mubr.f32.gmra.mrb[0].mxu0 %v393
  %v461 = vpop.f32.mrb[0].mxu0
  %v462 = vadd.f32 0.0, %v461
  %v463 = vpop.f32.mrb[0].mxu0
  %v464 = vadd.f32 0.0, %v463
  %465 = vdwg.mxu0
  %v466 = vadd.f32 %v388, %v462
  %v467 = vadd.f32 %v389, %v464
  %v468 = vmul.f32 %v466, 0.5
  %v469 = vmul.f32 %v467, 0.5
  %v470 = vsel %vm75, %v466, %v468
  %v471 = vsel %vm76, %v467, %v469
  %v472 = vtanh.pop %v470
  %v473 = vtanh.pop %v471
  %v474 = vmul.f32 %v472, 0.5
  %v475 = vmul.f32 %v473, 0.5
  %v476 = vadd.f32 %v474, 0.5
  %v477 = vadd.f32 %v475, 0.5
  %v478 = vsel %vm75, %v472, %v476
  %v479 = vsel %vm76, %v473, %v477
  %v480 = vmul.f32 %v478, %v382
  %v481 = vmul.f32 %v478, %v479
  %483 = vrot.lane.b32.xlu0 %v481, 64
  %v484 = vpop.permute.xlu0 %483
  %v486 = vadd.f32 %v480, %v484
  %v487 = vtanh.pop %v486
  %v488 = vmul.f32 %v479, %v487
  %vm489 = vcmp.eq.s32.totalorder %v67, 3
  %v490 = vsel %vm489, %v488, %v386
  %s491 = scalar_lea.vmem %s1, 64
  %v492 = vld [vmem:[%s491] sm:$0xff]
  %v493 = vld [vmem:[%s491 + $0x8] sm:$0xff]
  %495 = vrot.lane.b32.xlu0 %v488, 64
  %v496 = vpop.permute.xlu0 %495
  %v497 = vsel %vm79, %v496, 0
  %499 = vmatprep.subr.mxu0 %v19
  %500 = vmatpush1.msra.mxu0 %v18
  %501 = vmatprep.subr.mxu0 %v21
  %502 = vmatpush1.msra.mxu0 %v20
  %503 = vmatprep.subr.mxu0 %v23
  %504 = vmatpush1.msra.mxu0 %v22
  %505 = vmatprep.subr.mxu0 %v25
  %506 = vmatpush1.msra.mxu0 %v24
  %507 = vmatprep.subr.mxu0 %v27
  %508 = vmatpush1.msra.mxu0 %v26
  %509 = vmatprep.subr.mxu0 %v29
  %510 = vmatpush1.msra.mxu0 %v28
  %511 = vmatprep.subr.mxu0 %v31
  %512 = vmatpush1.msra.mxu0 %v30
  %513 = vmatprep.subr.mxu0 %v33
  %514 = vmatpush1.msra.mxu0 %v32
  %515 = vmatprep.subr.mxu0 0.0
  %516 = vmatpush1.msra.mxu0 0.0
  %517 = vmatprep.subr.mxu0 0.0
  %518 = vmatpush1.msra.mxu0 0.0
  %519 = vmatprep.subr.mxu0 0.0
  %520 = vmatpush1.msra.mxu0 0.0
  %521 = vmatprep.subr.mxu0 0.0
  %522 = vmatpush1.msra.mxu0 0.0
  %523 = vmatprep.subr.mxu0 0.0
  %524 = vmatpush1.msra.mxu0 0.0
  %525 = vmatprep.subr.mxu0 0.0
  %526 = vmatpush1.msra.mxu0 0.0
  %527 = vmatprep.subr.mxu0 0.0
  %528 = vmatpush1.msra.mxu0 0.0
  %529 = vmatprep.subr.mxu0 0.0
  %530 = vmatpush1.msra.mxu0 0.0
  %531 = vmatprep.subr.mxu0 0.0
  %532 = vmatpush1.msra.mxu0 0.0
  %533 = vmatprep.subr.mxu0 0.0
  %534 = vmatpush1.msra.mxu0 0.0
  %535 = vmatprep.subr.mxu0 0.0
  %536 = vmatpush1.msra.mxu0 0.0
  %537 = vmatprep.subr.mxu0 0.0
  %538 = vmatpush1.msra.mxu0 0.0
  %539 = vmatprep.subr.mxu0 0.0
  %540 = vmatpush1.msra.mxu0 0.0
  %541 = vmatprep.subr.mxu0 0.0
  %542 = vmatpush1.msra.mxu0 0.0
  %543 = vmatprep.subr.mxu0 0.0
  %544 = vmatpush1.msra.mxu0 0.0
  %545 = vmatprep.subr.mxu0 0.0
  %546 = vmatpush1.msra.mxu0 0.0
  %547 = vmatprep.subr.mxu0 0.0
  %548 = vmatpush1.msra.mxu0 0.0
  %549 = vmatprep.subr.mxu0 0.0
  %550 = vmatpush1.msra.mxu0 0.0
  %551 = vmatprep.subr.mxu0 0.0
  %552 = vmatpush1.msra.mxu0 0.0
  %553 = vmatprep.subr.mxu0 0.0
  %554 = vmatpush1.msra.mxu0 0.0
  %555 = vmatprep.subr.mxu0 0.0
  %556 = vmatpush1.msra.mxu0 0.0
  %557 = vmatprep.subr.mxu0 0.0
  %558 = vmatpush1.msra.mxu0 0.0
  %559 = vmatprep.subr.mxu0 0.0
  %560 = vmatpush1.msra.mxu0 0.0
  %561 = vmatprep.subr.mxu0 0.0
  %562 = vmatpush1.msra.mxu0 0.0
  %563 = vmatprep.mubr.f32.mxu0 0.0
  %564 = vmatmul.mubr.f32.gmra.mrb[0].mxu0 %v497
  %v565 = vpop.f32.mrb[0].mxu0
  %v566 = vadd.f32 0.0, %v565
  %v567 = vpop.f32.mrb[0].mxu0
  %v568 = vadd.f32 0.0, %v567
  %569 = vdwg.mxu0
  %v570 = vadd.f32 %v492, %v566
  %v571 = vadd.f32 %v493, %v568
  %v572 = vmul.f32 %v570, 0.5
  %v573 = vmul.f32 %v571, 0.5
  %v574 = vsel %vm75, %v570, %v572
  %v575 = vsel %vm76, %v571, %v573
  %v576 = vtanh.pop %v574
  %v577 = vtanh.pop %v575
  %v578 = vmul.f32 %v576, 0.5
  %v579 = vmul.f32 %v577, 0.5
  %v580 = vadd.f32 %v578, 0.5
  %v581 = vadd.f32 %v579, 0.5
  %v582 = vsel %vm75, %v576, %v580
  %v583 = vsel %vm76, %v577, %v581
  %v584 = vmul.f32 %v582, %v486
  %v585 = vmul.f32 %v582, %v583
  %587 = vrot.lane.b32.xlu0 %v585, 64
  %v588 = vpop.permute.xlu0 %587
  %v590 = vadd.f32 %v584, %v588
  %v591 = vtanh.pop %v590
  %v592 = vmul.f32 %v583, %v591
  %vm593 = vcmp.eq.s32.totalorder %v67, 4
  %v594 = vsel %vm593, %v592, %v490
  %s595 = scalar_lea.vmem %s1, 80
  %v596 = vld [vmem:[%s595] sm:$0xff]
  %v597 = vld [vmem:[%s595 + $0x8] sm:$0xff]
  %599 = vrot.lane.b32.xlu0 %v592, 64
  %v600 = vpop.permute.xlu0 %599
  %v601 = vsel %vm79, %v600, 0
  %603 = vmatprep.subr.mxu0 %v19
  %604 = vmatpush1.msra.mxu0 %v18
  %605 = vmatprep.subr.mxu0 %v21
  %606 = vmatpush1.msra.mxu0 %v20
  %607 = vmatprep.subr.mxu0 %v23
  %608 = vmatpush1.msra.mxu0 %v22
  %609 = vmatprep.subr.mxu0 %v25
  %610 = vmatpush1.msra.mxu0 %v24
  %611 = vmatprep.subr.mxu0 %v27
  %612 = vmatpush1.msra.mxu0 %v26
  %613 = vmatprep.subr.mxu0 %v29
  %614 = vmatpush1.msra.mxu0 %v28
  %615 = vmatprep.subr.mxu0 %v31
  %616 = vmatpush1.msra.mxu0 %v30
  %617 = vmatprep.subr.mxu0 %v33
  %618 = vmatpush1.msra.mxu0 %v32
  %619 = vmatprep.subr.mxu0 0.0
  %620 = vmatpush1.msra.mxu0 0.0
  %621 = vmatprep.subr.mxu0 0.0
  %622 = vmatpush1.msra.mxu0 0.0
  %623 = vmatprep.subr.mxu0 0.0
  %624 = vmatpush1.msra.mxu0 0.0
  %625 = vmatprep.subr.mxu0 0.0
  %626 = vmatpush1.msra.mxu0 0.0
  %627 = vmatprep.subr.mxu0 0.0
  %628 = vmatpush1.msra.mxu0 0.0
  %629 = vmatprep.subr.mxu0 0.0
  %630 = vmatpush1.msra.mxu0 0.0
  %631 = vmatprep.subr.mxu0 0.0
  %632 = vmatpush1.msra.mxu0 0.0
  %633 = vmatprep.subr.mxu0 0.0
  %634 = vmatpush1.msra.mxu0 0.0
  %635 = vmatprep.subr.mxu0 0.0
  %636 = vmatpush1.msra.mxu0 0.0
  %637 = vmatprep.subr.mxu0 0.0
  %638 = vmatpush1.msra.mxu0 0.0
  %639 = vmatprep.subr.mxu0 0.0
  %640 = vmatpush1.msra.mxu0 0.0
  %641 = vmatprep.subr.mxu0 0.0
  %642 = vmatpush1.msra.mxu0 0.0
  %643 = vmatprep.subr.mxu0 0.0
  %644 = vmatpush1.msra.mxu0 0.0
  %645 = vmatprep.subr.mxu0 0.0
  %646 = vmatpush1.msra.mxu0 0.0
  %647 = vmatprep.subr.mxu0 0.0
  %648 = vmatpush1.msra.mxu0 0.0
  %649 = vmatprep.subr.mxu0 0.0
  %650 = vmatpush1.msra.mxu0 0.0
  %651 = vmatprep.subr.mxu0 0.0
  %652 = vmatpush1.msra.mxu0 0.0
  %653 = vmatprep.subr.mxu0 0.0
  %654 = vmatpush1.msra.mxu0 0.0
  %655 = vmatprep.subr.mxu0 0.0
  %656 = vmatpush1.msra.mxu0 0.0
  %657 = vmatprep.subr.mxu0 0.0
  %658 = vmatpush1.msra.mxu0 0.0
  %659 = vmatprep.subr.mxu0 0.0
  %660 = vmatpush1.msra.mxu0 0.0
  %661 = vmatprep.subr.mxu0 0.0
  %662 = vmatpush1.msra.mxu0 0.0
  %663 = vmatprep.subr.mxu0 0.0
  %664 = vmatpush1.msra.mxu0 0.0
  %665 = vmatprep.subr.mxu0 0.0
  %666 = vmatpush1.msra.mxu0 0.0
  %667 = vmatprep.mubr.f32.mxu0 0.0
  %668 = vmatmul.mubr.f32.gmra.mrb[0].mxu0 %v601
  %v669 = vpop.f32.mrb[0].mxu0
  %v670 = vadd.f32 0.0, %v669
  %v671 = vpop.f32.mrb[0].mxu0
  %v672 = vadd.f32 0.0, %v671
  %673 = vdwg.mxu0
  %v674 = vadd.f32 %v596, %v670
  %v675 = vadd.f32 %v597, %v672
  %v676 = vmul.f32 %v674, 0.5
  %v677 = vmul.f32 %v675, 0.5
  %v678 = vsel %vm75, %v674, %v676
  %v679 = vsel %vm76, %v675, %v677
  %v680 = vtanh.pop %v678
  %v681 = vtanh.pop %v679
  %v682 = vmul.f32 %v680, 0.5
  %v683 = vmul.f32 %v681, 0.5
  %v684 = vadd.f32 %v682, 0.5
  %v685 = vadd.f32 %v683, 0.5
  %v686 = vsel %vm75, %v680, %v684
  %v687 = vsel %vm76, %v681, %v685
  %v688 = vmul.f32 %v686, %v590
  %v689 = vmul.f32 %v686, %v687
  %691 = vrot.lane.b32.xlu0 %v689, 64
  %v692 = vpop.permute.xlu0 %691
  %v694 = vadd.f32 %v688, %v692
  %v695 = vtanh.pop %v694
  %v696 = vmul.f32 %v687, %v695
  %vm697 = vcmp.eq.s32.totalorder %v67, 5
  %v698 = vsel %vm697, %v696, %v594
  %s699 = scalar_lea.vmem %s1, 96
  %v700 = vld [vmem:[%s699] sm:$0xff]
  %v701 = vld [vmem:[%s699 + $0x8] sm:$0xff]
  %703 = vrot.lane.b32.xlu0 %v696, 64
  %v704 = vpop.permute.xlu0 %703
  %v705 = vsel %vm79, %v704, 0
  %707 = vmatprep.subr.mxu0 %v19
  %708 = vmatpush1.msra.mxu0 %v18
  %709 = vmatprep.subr.mxu0 %v21
  %710 = vmatpush1.msra.mxu0 %v20
  %711 = vmatprep.subr.mxu0 %v23
  %712 = vmatpush1.msra.mxu0 %v22
  %713 = vmatprep.subr.mxu0 %v25
  %714 = vmatpush1.msra.mxu0 %v24
  %715 = vmatprep.subr.mxu0 %v27
  %716 = vmatpush1.msra.mxu0 %v26
  %717 = vmatprep.subr.mxu0 %v29
  %718 = vmatpush1.msra.mxu0 %v28
  %719 = vmatprep.subr.mxu0 %v31
  %720 = vmatpush1.msra.mxu0 %v30
  %721 = vmatprep.subr.mxu0 %v33
  %722 = vmatpush1.msra.mxu0 %v32
  %723 = vmatprep.subr.mxu0 0.0
  %724 = vmatpush1.msra.mxu0 0.0
  %725 = vmatprep.subr.mxu0 0.0
  %726 = vmatpush1.msra.mxu0 0.0
  %727 = vmatprep.subr.mxu0 0.0
  %728 = vmatpush1.msra.mxu0 0.0
  %729 = vmatprep.subr.mxu0 0.0
  %730 = vmatpush1.msra.mxu0 0.0
  %731 = vmatprep.subr.mxu0 0.0
  %732 = vmatpush1.msra.mxu0 0.0
  %733 = vmatprep.subr.mxu0 0.0
  %734 = vmatpush1.msra.mxu0 0.0
  %735 = vmatprep.subr.mxu0 0.0
  %736 = vmatpush1.msra.mxu0 0.0
  %737 = vmatprep.subr.mxu0 0.0
  %738 = vmatpush1.msra.mxu0 0.0
  %739 = vmatprep.subr.mxu0 0.0
  %740 = vmatpush1.msra.mxu0 0.0
  %741 = vmatprep.subr.mxu0 0.0
  %742 = vmatpush1.msra.mxu0 0.0
  %743 = vmatprep.subr.mxu0 0.0
  %744 = vmatpush1.msra.mxu0 0.0
  %745 = vmatprep.subr.mxu0 0.0
  %746 = vmatpush1.msra.mxu0 0.0
  %747 = vmatprep.subr.mxu0 0.0
  %748 = vmatpush1.msra.mxu0 0.0
  %749 = vmatprep.subr.mxu0 0.0
  %750 = vmatpush1.msra.mxu0 0.0
  %751 = vmatprep.subr.mxu0 0.0
  %752 = vmatpush1.msra.mxu0 0.0
  %753 = vmatprep.subr.mxu0 0.0
  %754 = vmatpush1.msra.mxu0 0.0
  %755 = vmatprep.subr.mxu0 0.0
  %756 = vmatpush1.msra.mxu0 0.0
  %757 = vmatprep.subr.mxu0 0.0
  %758 = vmatpush1.msra.mxu0 0.0
  %759 = vmatprep.subr.mxu0 0.0
  %760 = vmatpush1.msra.mxu0 0.0
  %761 = vmatprep.subr.mxu0 0.0
  %762 = vmatpush1.msra.mxu0 0.0
  %763 = vmatprep.subr.mxu0 0.0
  %764 = vmatpush1.msra.mxu0 0.0
  %765 = vmatprep.subr.mxu0 0.0
  %766 = vmatpush1.msra.mxu0 0.0
  %767 = vmatprep.subr.mxu0 0.0
  %768 = vmatpush1.msra.mxu0 0.0
  %769 = vmatprep.subr.mxu0 0.0
  %770 = vmatpush1.msra.mxu0 0.0
  %771 = vmatprep.mubr.f32.mxu0 0.0
  %772 = vmatmul.mubr.f32.gmra.mrb[0].mxu0 %v705
  %v773 = vpop.f32.mrb[0].mxu0
  %v774 = vadd.f32 0.0, %v773
  %v775 = vpop.f32.mrb[0].mxu0
  %v776 = vadd.f32 0.0, %v775
  %777 = vdwg.mxu0
  %v778 = vadd.f32 %v700, %v774
  %v779 = vadd.f32 %v701, %v776
  %v780 = vmul.f32 %v778, 0.5
  %v781 = vmul.f32 %v779, 0.5
  %v782 = vsel %vm75, %v778, %v780
  %v783 = vsel %vm76, %v779, %v781
  %v784 = vtanh.pop %v782
  %v785 = vtanh.pop %v783
  %v786 = vmul.f32 %v784, 0.5
  %v787 = vmul.f32 %v785, 0.5
  %v788 = vadd.f32 %v786, 0.5
  %v789 = vadd.f32 %v787, 0.5
  %v790 = vsel %vm75, %v784, %v788
  %v791 = vsel %vm76, %v785, %v789
  %v792 = vmul.f32 %v790, %v694
  %v793 = vmul.f32 %v790, %v791
  %795 = vrot.lane.b32.xlu0 %v793, 64
  %v796 = vpop.permute.xlu0 %795
  %v798 = vadd.f32 %v792, %v796
  %v799 = vtanh.pop %v798
  %v800 = vmul.f32 %v791, %v799
  %vm801 = vcmp.eq.s32.totalorder %v67, 6
  %v802 = vsel %vm801, %v800, %v698
  %s803 = scalar_lea.vmem %s1, 112
  %v804 = vld [vmem:[%s803] sm:$0xff]
  %v805 = vld [vmem:[%s803 + $0x8] sm:$0xff]
  %807 = vrot.lane.b32.xlu0 %v800, 64
  %v808 = vpop.permute.xlu0 %807
  %v809 = vsel %vm79, %v808, 0
  %811 = vmatprep.subr.mxu0 %v19
  %812 = vmatpush1.msra.mxu0 %v18
  %813 = vmatprep.subr.mxu0 %v21
  %814 = vmatpush1.msra.mxu0 %v20
  %815 = vmatprep.subr.mxu0 %v23
  %816 = vmatpush1.msra.mxu0 %v22
  %817 = vmatprep.subr.mxu0 %v25
  %818 = vmatpush1.msra.mxu0 %v24
  %819 = vmatprep.subr.mxu0 %v27
  %820 = vmatpush1.msra.mxu0 %v26
  %821 = vmatprep.subr.mxu0 %v29
  %822 = vmatpush1.msra.mxu0 %v28
  %823 = vmatprep.subr.mxu0 %v31
  %824 = vmatpush1.msra.mxu0 %v30
  %825 = vmatprep.subr.mxu0 %v33
  %826 = vmatpush1.msra.mxu0 %v32
  %827 = vmatprep.subr.mxu0 0.0
  %828 = vmatpush1.msra.mxu0 0.0
  %829 = vmatprep.subr.mxu0 0.0
  %830 = vmatpush1.msra.mxu0 0.0
  %831 = vmatprep.subr.mxu0 0.0
  %832 = vmatpush1.msra.mxu0 0.0
  %833 = vmatprep.subr.mxu0 0.0
  %834 = vmatpush1.msra.mxu0 0.0
  %835 = vmatprep.subr.mxu0 0.0
  %836 = vmatpush1.msra.mxu0 0.0
  %837 = vmatprep.subr.mxu0 0.0
  %838 = vmatpush1.msra.mxu0 0.0
  %839 = vmatprep.subr.mxu0 0.0
  %840 = vmatpush1.msra.mxu0 0.0
  %841 = vmatprep.subr.mxu0 0.0
  %842 = vmatpush1.msra.mxu0 0.0
  %843 = vmatprep.subr.mxu0 0.0
  %844 = vmatpush1.msra.mxu0 0.0
  %845 = vmatprep.subr.mxu0 0.0
  %846 = vmatpush1.msra.mxu0 0.0
  %847 = vmatprep.subr.mxu0 0.0
  %848 = vmatpush1.msra.mxu0 0.0
  %849 = vmatprep.subr.mxu0 0.0
  %850 = vmatpush1.msra.mxu0 0.0
  %851 = vmatprep.subr.mxu0 0.0
  %852 = vmatpush1.msra.mxu0 0.0
  %853 = vmatprep.subr.mxu0 0.0
  %854 = vmatpush1.msra.mxu0 0.0
  %855 = vmatprep.subr.mxu0 0.0
  %856 = vmatpush1.msra.mxu0 0.0
  %857 = vmatprep.subr.mxu0 0.0
  %858 = vmatpush1.msra.mxu0 0.0
  %859 = vmatprep.subr.mxu0 0.0
  %860 = vmatpush1.msra.mxu0 0.0
  %861 = vmatprep.subr.mxu0 0.0
  %862 = vmatpush1.msra.mxu0 0.0
  %863 = vmatprep.subr.mxu0 0.0
  %864 = vmatpush1.msra.mxu0 0.0
  %865 = vmatprep.subr.mxu0 0.0
  %866 = vmatpush1.msra.mxu0 0.0
  %867 = vmatprep.subr.mxu0 0.0
  %868 = vmatpush1.msra.mxu0 0.0
  %869 = vmatprep.subr.mxu0 0.0
  %870 = vmatpush1.msra.mxu0 0.0
  %871 = vmatprep.subr.mxu0 0.0
  %872 = vmatpush1.msra.mxu0 0.0
  %873 = vmatprep.subr.mxu0 0.0
  %874 = vmatpush1.msra.mxu0 0.0
  %875 = vmatprep.mubr.f32.mxu0 0.0
  %876 = vmatmul.mubr.f32.gmra.mrb[0].mxu0 %v809
  %v877 = vpop.f32.mrb[0].mxu0
  %v878 = vadd.f32 0.0, %v877
  %v879 = vpop.f32.mrb[0].mxu0
  %v880 = vadd.f32 0.0, %v879
  %881 = vdwg.mxu0
  %v882 = vadd.f32 %v804, %v878
  %v883 = vadd.f32 %v805, %v880
  %v884 = vmul.f32 %v882, 0.5
  %v885 = vmul.f32 %v883, 0.5
  %v886 = vsel %vm75, %v882, %v884
  %v887 = vsel %vm76, %v883, %v885
  %v888 = vtanh.pop %v886
  %v889 = vtanh.pop %v887
  %v890 = vmul.f32 %v888, 0.5
  %v891 = vmul.f32 %v889, 0.5
  %v892 = vadd.f32 %v890, 0.5
  %v893 = vadd.f32 %v891, 0.5
  %v894 = vsel %vm75, %v888, %v892
  %v895 = vsel %vm76, %v889, %v893
  %v896 = vmul.f32 %v894, %v798
  %v897 = vmul.f32 %v894, %v895
  %899 = vrot.lane.b32.xlu0 %v897, 64
  %v900 = vpop.permute.xlu0 %899
  %v902 = vadd.f32 %v896, %v900
  %v903 = vtanh.pop %v902
  %v904 = vmul.f32 %v895, %v903
  %vm905 = vcmp.eq.s32.totalorder %v67, 7
  %v906 = vsel %vm905, %v904, %v802
  %vm907 = vcmp.lt.s32.totalorder %v69, 32
  %909 = vrot.lane.b32.xlu0 %v906, 64
  %v910 = vpop.permute.xlu0 %909
  %913 = vrot.lane.b32.xlu0 %v904, 64
  %v914 = vpop.permute.xlu0 %913
  %v916 = vsel %vm907, %v910, %v914
  %917 = vst.msk [vmem:[%s3] sm:$0xff] %vm79, %v916
  // Predicated region
  $region10: #{blstm_forward.1} parent=0 // pred_check
    _
  $region11: #{blstm_forward.1} parent=0 // pred_check_branch
    %919 = sbr.rel (0) target = $region13
  $region12: #{blstm_forward.1} parent=0 // pred_region
    _
  $region13: #{blstm_forward.1} parent=0 // pred_fallthru
    _
  // Predicated region
  $region14: #{blstm_forward.1} parent=0 // pred_check
    _
  $region15: #{blstm_forward.1} parent=0 // pred_check_branch
    %921 = sbr.rel (0) target = $region17
  $region16: #{blstm_forward.1} parent=0 // pred_region
    _
  $region17: #{blstm_forward.1} parent=0 // pred_fallthru
    _

</llo_original>
